<compile_context>
chip_gen: v5e
topology: v5e:2x2
jax: 0.10.0
libtpu: 0.0.40
codegen_flags: <defaults>
</compile_context>

<pallas_src>
import functools
import math

import jax
import jax.numpy as jnp
from jax import lax
from jax.experimental import pallas as pl
from jax.experimental.pallas import tpu as pltpu


# ---------------------------------------------------------------------------
# Kernel bodies
# ---------------------------------------------------------------------------
def _attend(q_ref, k_ref, v_ref, *, scale, mm_dtype, approx_recip):
    """One (hb, tq) block: returns (out_f32 (hb,tq,D), weights_f32 (hb,tq,S))."""
    # Fold 1/sqrt(D) into Q (S*D mults instead of S*S); scale in fp32, then
    # cast to the matmul input dtype.
    q = (q_ref[...].astype(jnp.float32) * scale).astype(mm_dtype)
    k = k_ref[...].astype(mm_dtype)
    v = v_ref[...]

    # scores = Q @ K^T, contracting the last dims directly on the MXU
    # (batched over the packed-heads axis) -- no explicit transpose.
    scores = lax.dot_general(
        q, k, (((2,), (2,)), ((0,), (0,))),
        preferred_element_type=jnp.float32)              # (hb, tq, S) fp32

    # Numerically stable softmax over the key axis.
    m = jnp.max(scores, axis=-1, keepdims=True)
    p = jnp.exp(scores - m)
    denom = jnp.sum(p, axis=-1, keepdims=True)
    inv = pl.reciprocal(denom, approx=approx_recip)
    weights = p * inv                                    # (hb, tq, S) fp32

    # output = W @ V (batched), fp32 accumulation on the MXU.
    out = lax.dot_general(
        weights.astype(mm_dtype), v, (((2,), (1,)), ((0,), (0,))),
        preferred_element_type=jnp.float32)              # (hb, tq, D) fp32
    return out, weights


def _sdpa_kernel_with_w(q_ref, k_ref, v_ref, o_ref, w_ref, *,
                        scale, mm_dtype, approx_recip):
    out, weights = _attend(q_ref, k_ref, v_ref, scale=scale,
                           mm_dtype=mm_dtype, approx_recip=approx_recip)
    # o_ref may be (hb, tq, D) or lane-dense (hb, tq*D); reshape handles both.
    o_ref[...] = out.reshape(o_ref.shape).astype(o_ref.dtype)
    w_ref[...] = weights.astype(w_ref.dtype)


def _sdpa_kernel_out_only(q_ref, k_ref, v_ref, o_ref, *,
                          scale, mm_dtype, approx_recip):
    out, _ = _attend(q_ref, k_ref, v_ref, scale=scale,
                     mm_dtype=mm_dtype, approx_recip=approx_recip)
    o_ref[...] = out.reshape(o_ref.shape).astype(o_ref.dtype)


# ---------------------------------------------------------------------------
# Tiling heuristics
# ---------------------------------------------------------------------------
def _round_up(x, m):
    return ((x + m - 1) // m) * m


def _initial_q_tile(S):
    """Returns (tq, padded S). tq <= 512, multiple of 8 (or == S)."""
    if S <= 512:
        return S, S
    for tq in (512, 256, 128):
        if S % tq == 0:
            return tq, S
    # Awkward S: pad the *query* axis (keys stay exact, so softmax is
    # unaffected) rather than falling back to a full SxS scores slab.
    return 128, _round_up(S, 128)


def _vmem_block_bytes(hb, tq, S, D, itemsize, w_itemsize):
    """Approximate per-step VMEM footprint.

    Q/O (and W, if any) are double-buffered by the pipeline; K/V are
    single-buffered (pl.Buffered(1)) since their block index only changes with
    the outer head axis.  Also counts the ~3 live fp32 (hb,tq,S) intermediates
    (scores, exp, weights) inside the kernel body.
    """
    q = hb * tq * D * itemsize
    k = hb * S * D * itemsize
    v = hb * S * D * itemsize
    o = hb * tq * D * itemsize
    w = hb * tq * S * w_itemsize if w_itemsize else 0
    intermediates = 3 * hb * tq * S * 4
    return 2 * (q + o + w) + (k + v) + intermediates


def _choose_head_block(BH, S, D, tq, itemsize, w_itemsize, budget):
    """Largest divisor of BH whose blocks fit the budget.

    Caps hb so grid dim 0 stays >= 2 when possible (megacore can then shard
    the head axis instead of both cores holding full K/V).  Returns None if
    even hb=1 does not fit.
    """
    max_hb = BH // 2 if BH >= 2 else 1
    best = None
    for hb in range(1, max_hb + 1):
        if BH % hb:
            continue
        if _vmem_block_bytes(hb, tq, S, D, itemsize, w_itemsize) <= budget:
            best = hb
    return best


def _choose_tiling(BH, S, D, itemsize, w_itemsize, budget):
    tq, s_pad = _initial_q_tile(S)
    while True:
        hb = _choose_head_block(BH, S, D, tq, itemsize, w_itemsize, budget)
        if hb is not None:
            return hb, tq, s_pad
        if tq <= 8:
            return 1, tq, s_pad       # nothing fits; smallest tiles, let it ride
        tq = max(8, _round_up(tq // 2, 8))
        s_pad = S if S % tq == 0 else _round_up(S, tq)


def _vmem_limits():
    """(heuristic tiling budget, compiler vmem limit), derived per generation."""
    cap = None
    try:
        cap = int(pltpu.get_tpu_info().vmem_capacity_bytes)
    except Exception:
        cap = None
    if not cap:
        cap = 64 * 1024 * 1024        # conservative fallback (v7x per-core VMEM)
    limit = min(int(cap * 0.75), cap - (8 << 20))   # ~48 MiB @64, ~96 MiB @128
    limit = max(limit, 16 << 20)
    budget = int(limit * 0.6)
    return budget, limit


# ---------------------------------------------------------------------------
# Wrapper
# ---------------------------------------------------------------------------
def scaled_dot_product_attention(query, key, value, mask=None, *,
                                 return_weights=True,
                                 precision="highest",      # "highest" | "bf16"
                                 weights_dtype=None,       # default: query.dtype
                                 approx_softmax_recip=False,
                                 weights_buffers=2,
                                 vmem_budget_bytes=None):
    """query/key/value: [B, H, S, D].

    Returns (output [B,H,S,D], weights [B,H,S,S]) when return_weights=True
    (PyTorch module semantics), else just output.
    """
    if mask is not None:
        # TODO(synk): optional attention mask not implemented.
        raise NotImplementedError("mask is not supported by this kernel")
    if query.shape != key.shape or query.shape != value.shape:
        raise ValueError("query/key/value must share shape [B, H, S, D]")

    B, H, S, D = query.shape
    BH = B * H
    itemsize = jnp.dtype(query.dtype).itemsize
    w_dtype = jnp.dtype(weights_dtype) if weights_dtype is not None \
        else jnp.dtype(query.dtype)
    w_itemsize = w_dtype.itemsize if return_weights else 0

    budget, vmem_limit = _vmem_limits()
    if vmem_budget_bytes is not None:
        budget = vmem_budget_bytes
    hb, tq, s_pad = _choose_tiling(BH, S, D, itemsize, w_itemsize, budget)

    qf = query.reshape(BH, S, D)
    kf = key.reshape(BH, S, D)
    vf = value.reshape(BH, S, D)
    if s_pad != S:
        qf = jnp.pad(qf, ((0, 0), (0, s_pad - S), (0, 0)))

    grid = (BH // hb, s_pad // tq)

    # K/V blocks only change with the head axis i -> single-buffer them.
    kv_mode = pl.Buffered(1)
    in_specs = [
        pl.BlockSpec((hb, tq, D), lambda i, j: (i, j, 0)),                        # Q
        pl.BlockSpec((hb, S, D), lambda i, j: (i, 0, 0), pipeline_mode=kv_mode),  # K
        pl.BlockSpec((hb, S, D), lambda i, j: (i, 0, 0), pipeline_mode=kv_mode),  # V
    ]

    # Lane-dense output writeback when D < 128 and layout rules allow it.
    flat_out = (D % 128 != 0 and (tq * D) % 128 == 0
                and (hb % 8 == 0 or hb == BH))
    if flat_out:
        out_struct = jax.ShapeDtypeStruct((BH, s_pad * D), query.dtype)
        o_spec = pl.BlockSpec((hb, tq * D), lambda i, j: (i, j))
    else:
        out_struct = jax.ShapeDtypeStruct((BH, s_pad, D), query.dtype)
        o_spec = pl.BlockSpec((hb, tq, D), lambda i, j: (i, j, 0))

    mm_dtype = jnp.bfloat16 if precision == "bf16" else query.dtype
    scale = 1.0 / math.sqrt(D)

    compiler_params = pltpu.CompilerParams(
        dimension_semantics=("parallel", "parallel"),
        vmem_limit_bytes=vmem_limit,
    )
    kernel_kwargs = dict(scale=scale, mm_dtype=mm_dtype,
                         approx_recip=approx_softmax_recip)

    io_bytes = (BH * s_pad * D * itemsize          # Q (padded)
                + 2 * BH * S * D * itemsize        # K, V
                + BH * s_pad * D * itemsize)       # out
    flops = 4 * BH * s_pad * S * D                 # two matmuls
    transcendentals = BH * s_pad * S               # exp

    if return_weights:
        w_spec_kwargs = {}
        if weights_buffers != 2:
            w_spec_kwargs["pipeline_mode"] = pl.Buffered(weights_buffers)
        w_spec = pl.BlockSpec((hb, tq, S), lambda i, j: (i, j, 0),
                              **w_spec_kwargs)
        cost = pl.CostEstimate(
            flops=int(flops), transcendentals=int(transcendentals),
            bytes_accessed=int(io_bytes + BH * s_pad * S * w_itemsize))
        out, weights = pl.pallas_call(
            functools.partial(_sdpa_kernel_with_w, **kernel_kwargs),
            out_shape=(out_struct,
                       jax.ShapeDtypeStruct((BH, s_pad, S), w_dtype)),
            grid_spec=pl.GridSpec(grid=grid, in_specs=in_specs,
                                  out_specs=(o_spec, w_spec)),
            compiler_params=compiler_params,
            cost_estimate=cost,
        )(qf, kf, vf)
        out = out.reshape(BH, s_pad, D)[:, :S, :].reshape(B, H, S, D)
        weights = weights[:, :S, :].reshape(B, H, S, S)
        return out, weights

    cost = pl.CostEstimate(flops=int(flops),
                           transcendentals=int(transcendentals),
                           bytes_accessed=int(io_bytes))
    out = pl.pallas_call(
        functools.partial(_sdpa_kernel_out_only, **kernel_kwargs),
        out_shape=out_struct,
        grid_spec=pl.GridSpec(grid=grid, in_specs=in_specs, out_specs=o_spec),
        compiler_params=compiler_params,
        cost_estimate=cost,
    )(qf, kf, vf)
    return out.reshape(BH, s_pad, D)[:, :S, :].reshape(B, H, S, D)


# ---------------------------------------------------------------------------
# Reference + self-test
# ---------------------------------------------------------------------------
def _reference(query, key, value):
    d = query.shape[-1]
    scores = jnp.einsum("bhqd,bhkd->bhqk", query.astype(jnp.float32),
                        key.astype(jnp.float32)) / math.sqrt(d)
    w = jax.nn.softmax(scores, axis=-1)
    out = jnp.einsum("bhqk,bhkd->bhqd", w, value.astype(jnp.float32))
    return out, w


if __name__ == "__main__":
    key0 = jax.random.PRNGKey(0)

    # --- Test 1: module-default semantics (output, attention_weights), fp32 ---
    B, H, S, D = 2, 4, 8, 32
    kq, kk, kv = jax.random.split(key0, 3)
    query = jax.random.normal(kq, (B, H, S, D), dtype=jnp.float32)
    key_ = jax.random.normal(kk, (B, H, S, D), dtype=jnp.float32)
    value = jax.random.normal(kv, (B, H, S, D), dtype=jnp.float32)

    out, attn_w = scaled_dot_product_attention(query, key_, value)
    jax.block_until_ready((out, attn_w))
    ref_out, ref_w = _reference(query, key_, value)
    assert out.shape == (B, H, S, D) and attn_w.shape == (B, H, S, S)
    assert jnp.allclose(out, ref_out, atol=2e-5, rtol=2e-5)
    assert jnp.allclose(attn_w, ref_w, atol=2e-5, rtol=2e-5)

    # Output-only path (no S^2 writeback), exact softmax by default.
    out_fast = scaled_dot_product_attention(query, key_, value,
                                            return_weights=False)
    jax.block_until_ready(out_fast)
    assert out_fast.shape == (B, H, S, D)
    assert jnp.allclose(out_fast, ref_out, atol=2e-5, rtol=2e-5)

    # --- Test 2: lane-dense output path (D=64 < 128, hb multiple of 8) -------
    B2, H2, S2, D2 = 2, 8, 16, 64
    kq2, kk2, kv2 = jax.random.split(jax.random.PRNGKey(1), 3)
    q2 = jax.random.normal(kq2, (B2, H2, S2, D2), dtype=jnp.float32)
    k2 = jax.random.normal(kk2, (B2, H2, S2, D2), dtype=jnp.float32)
    v2 = jax.random.normal(kv2, (B2, H2, S2, D2), dtype=jnp.float32)
    out2, w2 = scaled_dot_product_attention(q2, k2, v2)
    jax.block_until_ready((out2, w2))
    ref_out2, ref_w2 = _reference(q2, k2, v2)
    assert out2.shape == (B2, H2, S2, D2) and w2.shape == (B2, H2, S2, S2)
    assert jnp.allclose(out2, ref_out2, atol=2e-5, rtol=2e-5)
    assert jnp.allclose(w2, ref_w2, atol=2e-5, rtol=2e-5)

    # --- Test 3: bf16 MXU precision flag (loose tolerance vs fp32 reference) --
    out_bf16 = scaled_dot_product_attention(query, key_, value,
                                            return_weights=False,
                                            precision="bf16")
    jax.block_until_ready(out_bf16)
    assert out_bf16.shape == (B, H, S, D)
    assert jnp.allclose(out_bf16, ref_out, atol=1e-1, rtol=1e-1)

    print("KERNEL_OK")
</pallas_src>

<mosaic_0001>
module attributes {stable_mosaic.version = 11 : i64} {
  func.func @_sdpa_kernel_with_w(%arg0: i32, %arg1: i32, %arg2: memref<4x8x32xf32, #tpu.memory_space<vmem>>, %arg3: memref<4x8x32xf32, #tpu.memory_space<vmem>>, %arg4: memref<4x8x32xf32, #tpu.memory_space<vmem>>, %arg5: memref<4x8x32xf32, #tpu.memory_space<vmem>>, %arg6: memref<4x8x8xf32, #tpu.memory_space<vmem>>) attributes {dimension_semantics = [#tpu.dimension_semantics<parallel>, #tpu.dimension_semantics<parallel>], iteration_bounds = array<i64: 2, 1>, scalar_prefetch = 0 : i64, scratch_operands = 0 : i64, tpu.core_type = #tpu.core_type<tc>, window_params = [{transform_indices = @transform_0, window_bounds = array<i64: 4, 8, 32>}, {pipeline_mode = #tpu.pipeline_mode<synchronous>, transform_indices = @transform_1, window_bounds = array<i64: 4, 8, 32>}, {pipeline_mode = #tpu.pipeline_mode<synchronous>, transform_indices = @transform_2, window_bounds = array<i64: 4, 8, 32>}, {transform_indices = @transform_3, window_bounds = array<i64: 4, 8, 32>}, {transform_indices = @transform_4, window_bounds = array<i64: 4, 8, 8>}]} {
    %c0 = arith.constant 0 : index
    %c0_0 = arith.constant 0 : index
    %c0_1 = arith.constant 0 : index
    %0 = vector.load %arg2[%c0, %c0_0, %c0_1] : memref<4x8x32xf32, #tpu.memory_space<vmem>>, vector<4x8x32xf32>
    %cst = arith.constant 0.176776692 : f32
    %1 = vector.broadcast %cst : f32 to vector<4x8x32xf32>
    %2 = arith.mulf %0, %1 : vector<4x8x32xf32>
    %c0_2 = arith.constant 0 : index
    %c0_3 = arith.constant 0 : index
    %c0_4 = arith.constant 0 : index
    %3 = vector.load %arg3[%c0_2, %c0_3, %c0_4] : memref<4x8x32xf32, #tpu.memory_space<vmem>>, vector<4x8x32xf32>
    %c0_5 = arith.constant 0 : index
    %c0_6 = arith.constant 0 : index
    %c0_7 = arith.constant 0 : index
    %4 = vector.load %arg4[%c0_5, %c0_6, %c0_7] : memref<4x8x32xf32, #tpu.memory_space<vmem>>, vector<4x8x32xf32>
    %cst_8 = arith.constant dense<0.000000e+00> : vector<4x8x8xf32>
    %5 = tpu.matmul %2, %3, %cst_8 {dimension_numbers = #tpu.dot_dimension_numbers<[2], [2], [1], [1], [0, 0, 0, 1, 1, 1], [0], [0]>} : vector<4x8x32xf32>, vector<4x8x32xf32>, vector<4x8x8xf32> -> vector<4x8x8xf32>
    %cst_9 = arith.constant dense<0xFF800000> : vector<4x8xf32>
    %6 = vector.multi_reduction <maximumf>, %5, %cst_9 [2] : vector<4x8x8xf32> to vector<4x8xf32>
    %7 = vector.shape_cast %6 : vector<4x8xf32> to vector<4x8x1xf32>
    %8 = vector.broadcast %7 : vector<4x8x1xf32> to vector<4x8x8xf32>
    %9 = arith.subf %5, %8 : vector<4x8x8xf32>
    %10 = math.exp %9 : vector<4x8x8xf32>
    %cst_10 = arith.constant dense<0.000000e+00> : vector<4x8xf32>
    %11 = vector.multi_reduction <add>, %10, %cst_10 [2] : vector<4x8x8xf32> to vector<4x8xf32>
    %12 = vector.shape_cast %11 : vector<4x8xf32> to vector<4x8x1xf32>
    %13 = tpu.reciprocal %12 : vector<4x8x1xf32> -> vector<4x8x1xf32>
    %14 = vector.broadcast %13 : vector<4x8x1xf32> to vector<4x8x8xf32>
    %15 = arith.mulf %10, %14 : vector<4x8x8xf32>
    %cst_11 = arith.constant dense<0.000000e+00> : vector<4x8x32xf32>
    %16 = tpu.matmul %15, %4, %cst_11 {dimension_numbers = #tpu.dot_dimension_numbers<[2], [1], [1], [2], [0, 0, 0, 1, 1, 2], [0], [0]>} : vector<4x8x8xf32>, vector<4x8x32xf32>, vector<4x8x32xf32> -> vector<4x8x32xf32>
    %c0_12 = arith.constant 0 : index
    %c0_13 = arith.constant 0 : index
    %c0_14 = arith.constant 0 : index
    %17 = vector.load %arg5[%c0_12, %c0_13, %c0_14] : memref<4x8x32xf32, #tpu.memory_space<vmem>>, vector<4x8x32xf32>
    tpu.vector_store %arg5[%c0_12, %c0_13, %c0_14], %16 {strides = array<i32>} : memref<4x8x32xf32, #tpu.memory_space<vmem>>, vector<4x8x32xf32>,
    %c0_15 = arith.constant 0 : index
    %c0_16 = arith.constant 0 : index
    %c0_17 = arith.constant 0 : index
    %18 = vector.load %arg6[%c0_15, %c0_16, %c0_17] : memref<4x8x8xf32, #tpu.memory_space<vmem>>, vector<4x8x8xf32>
    tpu.vector_store %arg6[%c0_15, %c0_16, %c0_17], %15 {strides = array<i32>} : memref<4x8x8xf32, #tpu.memory_space<vmem>>, vector<4x8x8xf32>,
    return
  }
  func.func @transform_0(%arg0: i32, %arg1: i32) -> (i32, i32, i32) {
    %c0_i32 = arith.constant 0 : i32
    %c0_i32_0 = arith.constant 0 : i32
    return %arg0, %arg1, %c0_i32 : i32, i32, i32
  }
  func.func @transform_1(%arg0: i32, %arg1: i32) -> (i32, i32, i32) {
    %c0_i32 = arith.constant 0 : i32
    %c0_i32_0 = arith.constant 0 : i32
    %c0_i32_1 = arith.constant 0 : i32
    return %arg0, %c0_i32, %c0_i32_0 : i32, i32, i32
  }
  func.func @transform_2(%arg0: i32, %arg1: i32) -> (i32, i32, i32) {
    %c0_i32 = arith.constant 0 : i32
    %c0_i32_0 = arith.constant 0 : i32
    %c0_i32_1 = arith.constant 0 : i32
    return %arg0, %c0_i32, %c0_i32_0 : i32, i32, i32
  }
  func.func @transform_3(%arg0: i32, %arg1: i32) -> (i32, i32, i32) {
    %c0_i32 = arith.constant 0 : i32
    %c0_i32_0 = arith.constant 0 : i32
    return %arg0, %arg1, %c0_i32 : i32, i32, i32
  }
  func.func @transform_4(%arg0: i32, %arg1: i32) -> (i32, i32, i32) {
    %c0_i32 = arith.constant 0 : i32
    %c0_i32_0 = arith.constant 0 : i32
    return %arg0, %arg1, %c0_i32 : i32, i32, i32
  }
}

</mosaic_0001>

<llo_original>
// kernel: tpu_custom_call.1
$region0: #{tpu_custom_call.1}
  #allocation0 [shape = 'u32[]', space=smem, size = 0x4, offset = 0x4, fixed_abs, tag = 'smem constant byte address 0x4 - core index']
  #allocation1 [shape = 'u32[72,128]{1,0:T(1,128)}', space=vmem, size = 0x9000, scoped, tag = 'internal scratch']
  %s0 = inlined_call_operand.hbm [shape: f32[8,8,32], index: 0, kind: input, shape index: {}]
  %s1 = inlined_call_operand.hbm [shape: f32[8,8,32], index: 1, kind: input, shape index: {}]
  %s2 = inlined_call_operand.hbm [shape: f32[8,8,32], index: 2, kind: input, shape index: {}]
  %s3 = inlined_call_operand.hbm [shape: f32[8,8,32], index: 3, kind: output, shape index: {0}]
  %s4 = inlined_call_operand.hbm [shape: f32[8,8,8], index: 4, kind: output, shape index: {1}]
  %5 = xla_tuple %s3, %s4
  %s6 = sld [smem:[#allocation0]]
  $region65: #{tpu_custom_call.1} parent=0
    _
  %s8 = ssub.s32 1, %s6
  %s9 = scalar_select 0, %s8, %s6
  $region1: #{tpu_custom_call.1} parent=0
    #allocation2 [shape = 'u8[32768]{0}', space=vmem, size = 0x8000, scoped, tag = 'input window, operand 0']
    #allocation3 [shape = 's32[2]{0}', space=sflag, size = 0x8, scoped, tag = 'scoped memory for tpu_custom_call.1']
    #allocation4 [shape = 's32[2]{0}', space=sflag, size = 0x8, scoped, tag = 'scoped memory for tpu_custom_call.1']
    #allocation5 [shape = 'u8[16384]{0}', space=vmem, size = 0x4000, scoped, tag = 'input window, operand 1, single buffered']
    #allocation6 [shape = 's32[1]{0}', space=sflag, size = 0x4, scoped, tag = 'scoped memory for tpu_custom_call.1']
    #allocation7 [shape = 'u8[16384]{0}', space=vmem, size = 0x4000, scoped, tag = 'input window, operand 2, single buffered']
    #allocation8 [shape = 'u8[32768]{0}', space=vmem, size = 0x8000, scoped, tag = 'output window, operand 0']
    #allocation9 [shape = 'u8[32768]{0}', space=vmem, size = 0x8000, scoped, tag = 'output window, operand 1']
    #allocation10 [shape = 's32[2]{0}', space=sflag, size = 0x8, scoped, tag = 'scoped memory for tpu_custom_call.1']
    %10 = vsyncpa [#allocation3], 0
    %s11 = scalar_lea.sflag [#allocation3], 1
    %12 = vsyncpa %s11, 0
    %13 = vsyncpa [#allocation6], 0
    %14 = vsyncpa [#allocation4], 0
    %s15 = scalar_lea.sflag [#allocation4], 1
    %16 = vsyncpa %s15, 0
    %17 = vsyncpa [#allocation10], 0
    %s18 = scalar_lea.sflag [#allocation10], 1
    %19 = vsyncpa %s18, 0
    loop: start=0, step=1, limit=4
    $region2: #{tpu_custom_call.1} parent=1 // loop_pre_header
      _
    $region3: #{tpu_custom_call.1} parent=1 // loop_header
      %s21 = sphi 0, %s25
      %p22 = scmp.ge.s32.totalorder %s21, 4
      %s28 = sphi 0, %s40
      %s29 = sphi 0, %s36
      %s30 = sphi 0, %s28
      %s31 = sphi 0, %s29
      %s32 = sphi 0, %s30
      %s33 = sphi 0, %s31
      %s45 = sphi 0, %s47
      %s48 = sphi 0, %s45
      %s49 = sphi 0, %s48
      %s65 = sphi 0, %s49
      %s71 = sphi 0, %s73
      %s74 = sphi 0, %s71
      %s75 = sphi 0, %s74
      %s91 = sphi 0, %s75
      %s97 = sphi 0, %s99
      %s100 = sphi 0, %s97
      %s101 = sphi 0, %s100
      %s117 = sphi 0, %s101
      %s125 = sphi 0, %s127
      %s128 = sphi 0, %s125
      %s129 = sphi 0, %s128
      %s145 = sphi 0, %s129
      %s153 = sphi 0, %s155
      %s156 = sphi 0, %s153
      %s157 = sphi 0, %s156
      %s173 = sphi 0, %s157
    $region4: #{tpu_custom_call.1} parent=1 // loop_header_branch
      %24 = sbr.rel (%p22) target = $region8
    $region5: #{tpu_custom_call.1} parent=1 // loop_body
      %s26 = ssub.s32 %s21, 1
      %s27 = ssub.s32 %s21, 2
      %s34 = sadd.s32 1, %s29
      %p35 = scmp.ge.s32.totalorder %s34, 1
      %s36 = scalar_select %p35, 0, %s34
      %s37 = sadd.s32 1, %s28
      %s38 = scalar_select %p35, %s37, %s28
      %p39 = scmp.ge.s32.totalorder %s38, 2
      %s40 = scalar_select %p39, 0, %s38
      %s41 = ssub.s32 %s28, %s40
      %s42 = ssub.s32 %s29, %s36
      %s43 = sor.u32 %s41, %s42
      %p44 = scmp.eq.s32.totalorder %s43, 0
      %s46 = sadd.s32 %s45, 1
      %s47 = scalar_select %p44, %s45, %s46
      %p50 = pneg %p44
      %p51 = scmp.eq.s32.totalorder %s21, 1
      %p52 = por %p50, %p51
      %p53 = scmp.ne.s32.totalorder %s45, %s48
      %p54 = scmp.eq.s32.totalorder %s21, 0
      %p55 = por %p53, %p54
      %p56 = scmp.ne.s32.totalorder %s45, %s48
      %p57 = scmp.eq.s32.totalorder %s26, 1
      %p58 = por %p56, %p57
      %p59 = scmp.ne.s32.totalorder %s48, %s49
      %p60 = scmp.eq.s32.totalorder %s26, 0
      %p61 = por %p59, %p60
      %p62 = scmp.ne.s32.totalorder %s48, %s49
      %p63 = scmp.eq.s32.totalorder %s27, 1
      %p64 = por %p62, %p63
      %p66 = scmp.ne.s32.totalorder %s49, %s65
      %p67 = scmp.eq.s32.totalorder %s27, 0
      %p68 = por %p66, %p67
      %s69 = ssub.s32 %s28, %s40
      %p70 = scmp.eq.s32.totalorder %s69, 0
      %s72 = sadd.s32 %s71, 1
      %s73 = scalar_select %p70, %s71, %s72
      %p76 = pneg %p70
      %p77 = scmp.eq.s32.totalorder %s21, 1
      %p78 = por %p76, %p77
      %p79 = scmp.ne.s32.totalorder %s71, %s74
      %p80 = scmp.eq.s32.totalorder %s21, 0
      %p81 = por %p79, %p80
      %p82 = scmp.ne.s32.totalorder %s71, %s74
      %p83 = scmp.eq.s32.totalorder %s26, 1
      %p84 = por %p82, %p83
      %p85 = scmp.ne.s32.totalorder %s74, %s75
      %p86 = scmp.eq.s32.totalorder %s26, 0
      %p87 = por %p85, %p86
      %p88 = scmp.ne.s32.totalorder %s74, %s75
      %p89 = scmp.eq.s32.totalorder %s27, 1
      %p90 = por %p88, %p89
      %p92 = scmp.ne.s32.totalorder %s75, %s91
      %p93 = scmp.eq.s32.totalorder %s27, 0
      %p94 = por %p92, %p93
      %s95 = ssub.s32 %s28, %s40
      %p96 = scmp.eq.s32.totalorder %s95, 0
      %s98 = sadd.s32 %s97, 1
      %s99 = scalar_select %p96, %s97, %s98
      %p102 = pneg %p96
      %p103 = scmp.eq.s32.totalorder %s21, 1
      %p104 = por %p102, %p103
      %p105 = scmp.ne.s32.totalorder %s97, %s100
      %p106 = scmp.eq.s32.totalorder %s21, 0
      %p107 = por %p105, %p106
      %p108 = scmp.ne.s32.totalorder %s97, %s100
      %p109 = scmp.eq.s32.totalorder %s26, 1
      %p110 = por %p108, %p109
      %p111 = scmp.ne.s32.totalorder %s100, %s101
      %p112 = scmp.eq.s32.totalorder %s26, 0
      %p113 = por %p111, %p112
      %p114 = scmp.ne.s32.totalorder %s100, %s101
      %p115 = scmp.eq.s32.totalorder %s27, 1
      %p116 = por %p114, %p115
      %p118 = scmp.ne.s32.totalorder %s101, %s117
      %p119 = scmp.eq.s32.totalorder %s27, 0
      %p120 = por %p118, %p119
      %s121 = ssub.s32 %s28, %s40
      %s122 = ssub.s32 %s29, %s36
      %s123 = sor.u32 %s121, %s122
      %p124 = scmp.eq.s32.totalorder %s123, 0
      %s126 = sadd.s32 %s125, 1
      %s127 = scalar_select %p124, %s125, %s126
      %p130 = pneg %p124
      %p131 = scmp.eq.s32.totalorder %s21, 1
      %p132 = por %p130, %p131
      %p133 = scmp.ne.s32.totalorder %s125, %s128
      %p134 = scmp.eq.s32.totalorder %s21, 0
      %p135 = por %p133, %p134
      %p136 = scmp.ne.s32.totalorder %s125, %s128
      %p137 = scmp.eq.s32.totalorder %s26, 1
      %p138 = por %p136, %p137
      %p139 = scmp.ne.s32.totalorder %s128, %s129
      %p140 = scmp.eq.s32.totalorder %s26, 0
      %p141 = por %p139, %p140
      %p142 = scmp.ne.s32.totalorder %s128, %s129
      %p143 = scmp.eq.s32.totalorder %s27, 1
      %p144 = por %p142, %p143
      %p146 = scmp.ne.s32.totalorder %s129, %s145
      %p147 = scmp.eq.s32.totalorder %s27, 0
      %p148 = por %p146, %p147
      %s149 = ssub.s32 %s28, %s40
      %s150 = ssub.s32 %s29, %s36
      %s151 = sor.u32 %s149, %s150
      %p152 = scmp.eq.s32.totalorder %s151, 0
      %s154 = sadd.s32 %s153, 1
      %s155 = scalar_select %p152, %s153, %s154
      %p158 = pneg %p152
      %p159 = scmp.eq.s32.totalorder %s21, 1
      %p160 = por %p158, %p159
      %p161 = scmp.ne.s32.totalorder %s153, %s156
      %p162 = scmp.eq.s32.totalorder %s21, 0
      %p163 = por %p161, %p162
      %p164 = scmp.ne.s32.totalorder %s153, %s156
      %p165 = scmp.eq.s32.totalorder %s26, 1
      %p166 = por %p164, %p165
      %p167 = scmp.ne.s32.totalorder %s156, %s157
      %p168 = scmp.eq.s32.totalorder %s26, 0
      %p169 = por %p167, %p168
      %p170 = scmp.ne.s32.totalorder %s156, %s157
      %p171 = scmp.eq.s32.totalorder %s27, 1
      %p172 = por %p170, %p171
      %p174 = scmp.ne.s32.totalorder %s157, %s173
      %p175 = scmp.eq.s32.totalorder %s27, 0
      %p176 = por %p174, %p175
      %p177 = scmp.le.s32.totalorder 1, %s21
      %p178 = scmp.lt.s32.totalorder %s21, 3
      %p179 = pnand %p177, %p178
      %p180 = pneg %p179
      // Predicated region
      $region9: #{tpu_custom_call.1} parent=5 // pred_check
        _
      $region10: #{tpu_custom_call.1} parent=5 // pred_check_branch
        %182 = sbr.rel (%p179) target = $region12
      $region11: #{tpu_custom_call.1} parent=5 // pred_region
        %s183 = ssub.s32 %s21, 1
        // Predicated region
        $region13: #{tpu_custom_call.1} parent=11 // pred_check
          %p184 = pneg %p87
        $region14: #{tpu_custom_call.1} parent=11 // pred_check_branch
          %186 = sbr.rel (%p184) target = $region16
        $region15: #{tpu_custom_call.1} parent=11 // pred_region
          %s187 = smul.u32 4, %s30
          %189 = vsyncadd [#allocation6], 0
          %s190 = smul.addr %s187, 8
          %s191 = scalar_lea.hbm %s1, %s190
          %s192 = sshll.u32 %s191, 4
          %s193 = int_to_ptr.hbm [resolvable:$true] %s192
          %s194 = sshll.u32 [#allocation5], 4
          %s195 = int_to_ptr.vmem [resolvable:$true] %s194
          %200 = dma.hbm_to_vmem [thread:$0]  %s193, 512, %s195, [#allocation6], 128, 128, 8
        $region16: #{tpu_custom_call.1} parent=11 // pred_fallthru
          _
        // Predicated region
        $region17: #{tpu_custom_call.1} parent=11 // pred_check
          %p201 = pneg %p113
        $region18: #{tpu_custom_call.1} parent=11 // pred_check_branch
          %203 = sbr.rel (%p201) target = $region20
        $region19: #{tpu_custom_call.1} parent=11 // pred_region
          %s204 = smul.u32 4, %s30
          %206 = vsyncadd [#allocation6], 0
          %s207 = smul.addr %s204, 8
          %s208 = scalar_lea.hbm %s2, %s207
          %s209 = sshll.u32 %s208, 4
          %s210 = int_to_ptr.hbm [resolvable:$true] %s209
          %s211 = sshll.u32 [#allocation7], 4
          %s212 = int_to_ptr.vmem [resolvable:$true] %s211
          %217 = dma.hbm_to_vmem [thread:$0]  %s210, 512, %s212, [#allocation6], 128, 128, 8
        $region20: #{tpu_custom_call.1} parent=11 // pred_fallthru
          _
      $region12: #{tpu_custom_call.1} parent=5 // pred_fallthru
        _
      %p218 = scmp.lt.s32.totalorder %s21, 2
      // Predicated region
      $region21: #{tpu_custom_call.1} parent=5 // pred_check
        %p219 = pneg %p218
      $region22: #{tpu_custom_call.1} parent=5 // pred_check_branch
        %221 = sbr.rel (%p219) target = $region24
      $region23: #{tpu_custom_call.1} parent=5 // pred_region
        // Predicated region
        $region25: #{tpu_custom_call.1} parent=23 // pred_check
          %p222 = pneg %p55
        $region26: #{tpu_custom_call.1} parent=23 // pred_check_branch
          %224 = sbr.rel (%p222) target = $region28
        $region27: #{tpu_custom_call.1} parent=23 // pred_region
          %s225 = sand.u32 %s45, 1
          %s226 = scalar_lea.sflag [#allocation3], %s225
          %s227 = sand.u32 %s45, 1
          %s228 = smul.addr %s227, 32
          %s229 = scalar_lea.vmem [#allocation2], %s228
          %s230 = smul.u32 4, %s28
          %232 = vsyncadd %s226, 0
          %s233 = sadd.s32 %s29, %s230
          %s234 = smul.addr %s233, 8
          %s235 = scalar_lea.hbm %s0, %s234
          %s236 = sshll.u32 %s235, 4
          %s237 = int_to_ptr.hbm [resolvable:$true] %s236
          %s238 = sshll.u32 %s229, 4
          %s239 = int_to_ptr.vmem [resolvable:$true] %s238
          %244 = dma.hbm_to_vmem [thread:$0]  %s237, 512, %s239, %s226, 128, 128, 8
        $region28: #{tpu_custom_call.1} parent=23 // pred_fallthru
          _
      $region24: #{tpu_custom_call.1} parent=5 // pred_fallthru
        _
      %p245 = scmp.le.s32.totalorder 1, %s21
      %p246 = scmp.lt.s32.totalorder %s21, 3
      %p247 = pnand %p245, %p246
      %p248 = pneg %p247
      // Predicated region
      $region29: #{tpu_custom_call.1} parent=5 // pred_check
        _
      $region30: #{tpu_custom_call.1} parent=5 // pred_check_branch
        %250 = sbr.rel (%p247) target = $region32
      $region31: #{tpu_custom_call.1} parent=5 // pred_region
        %s251 = ssub.s32 %s21, 1
        %s252 = sand.u32 %s48, 1
        %s253 = scalar_lea.sflag [#allocation3], %s252
        %s254 = sand.u32 %s48, 1
        %s255 = smul.addr %s254, 32
        %s256 = scalar_lea.vmem [#allocation2], %s255
        // Predicated region
        $region33: #{tpu_custom_call.1} parent=31 // pred_check
          %p257 = pneg %p61
        $region34: #{tpu_custom_call.1} parent=31 // pred_check_branch
          %259 = sbr.rel (%p257) target = $region36
        $region35: #{tpu_custom_call.1} parent=31 // pred_region
          %261 = dma.done %s253, 512
        $region36: #{tpu_custom_call.1} parent=31 // pred_fallthru
          _
        // Predicated region
        $region37: #{tpu_custom_call.1} parent=31 // pred_check
          %p262 = pneg %p87
        $region38: #{tpu_custom_call.1} parent=31 // pred_check_branch
          %264 = sbr.rel (%p262) target = $region40
        $region39: #{tpu_custom_call.1} parent=31 // pred_region
          %266 = dma.done [#allocation6], 512
        $region40: #{tpu_custom_call.1} parent=31 // pred_fallthru
          _
        // Predicated region
        $region41: #{tpu_custom_call.1} parent=31 // pred_check
          %p267 = pneg %p113
        $region42: #{tpu_custom_call.1} parent=31 // pred_check_branch
          %269 = sbr.rel (%p267) target = $region44
        $region43: #{tpu_custom_call.1} parent=31 // pred_region
          %271 = dma.done [#allocation6], 512
        $region44: #{tpu_custom_call.1} parent=31 // pred_fallthru
          _
        %s272 = sand.u32 %s48, 1
        %s273 = scalar_lea.sflag [#allocation3], %s272
        %s274 = sand.u32 %s48, 1
        %s275 = smul.addr %s274, 32
        %s276 = scalar_lea.vmem [#allocation2], %s275
        %p277 = pneg %p61
        %p278 = pneg %p58
        %p279 = pneg %p87
        %p280 = pneg %p84
        %p281 = pneg %p113
        %p282 = pneg %p110
        %p283 = pneg %p141
        %p284 = pneg %p138
        %s285 = sand.u32 %s128, 1
        %s286 = scalar_lea.sflag [#allocation4], %s285
        %s287 = sand.u32 %s128, 1
        %s288 = smul.addr %s287, 32
        %s289 = scalar_lea.vmem [#allocation8], %s288
        %p290 = pneg %p169
        %p291 = pneg %p166
        %s292 = sand.u32 %s156, 1
        %s293 = scalar_lea.sflag [#allocation10], %s292
        %s294 = sand.u32 %s156, 1
        %s295 = smul.addr %s294, 32
        %s296 = scalar_lea.vmem [#allocation9], %s295
        %s297 = smul.u32 4, %s30
        %s298 = smul.u32 4, %s30
        %s299 = smul.u32 4, %s30
        %s300 = smul.u32 4, %s30
        %s301 = smul.u32 4, %s30
        %v302 = vld [vmem:[%s256] sm:$0xff]
        %v303 = vld [vmem:[%s256 + $0x8] sm:$0xff]
        %v304 = vld [vmem:[%s256 + $0x10] sm:$0xff]
        %v305 = vld [vmem:[%s256 + $0x18] sm:$0xff]
        %v306 = vmul.f32 %v302, 0.17677669
        %v307 = vmul.f32 %v303, 0.17677669
        %v308 = vmul.f32 %v304, 0.17677669
        %v309 = vmul.f32 %v305, 0.17677669
        %v310 = vld [vmem:[#allocation5] sm:$0xff]
        %v311 = vld [vmem:[#allocation5 + $0x8] sm:$0xff]
        %v312 = vld [vmem:[#allocation5 + $0x10] sm:$0xff]
        %v313 = vld [vmem:[#allocation5 + $0x18] sm:$0xff]
        %v314 = vld [vmem:[#allocation7] sm:$0xff]
        %v315 = vld [vmem:[#allocation7 + $0x8] sm:$0xff]
        %v316 = vld [vmem:[#allocation7 + $0x10] sm:$0xff]
        %v317 = vld [vmem:[#allocation7 + $0x18] sm:$0xff]
        %vm318 = vcmask 261120
        %v320 = vsel %vm318, %v306, 0
        %v323 = vsel %vm318, %v310, 0
        %325 = vmatpush.xpose.msra.mxu0 0.0
        %326 = vmatpush.xpose.msra.mxu0 0.0
        %327 = vmatpush.xpose.msra.mxu0 0.0
        %328 = vmatpush.xpose.msra.mxu0 0.0
        %329 = vmatpush.xpose.msra.mxu0 0.0
        %330 = vmatpush.xpose.msra.mxu0 0.0
        %331 = vmatpush.xpose.msra.mxu0 0.0
        %332 = vmatpush.xpose.msra.mxu0 0.0
        %333 = vmatpush.xpose.msra.mxu0 0.0
        %334 = vmatpush.xpose.msra.mxu0 0.0
        %335 = vmatpush.xpose.msra.mxu0 0.0
        %336 = vmatpush.xpose.msra.mxu0 0.0
        %337 = vmatpush.xpose.msra.mxu0 0.0
        %338 = vmatpush.xpose.msra.mxu0 0.0
        %339 = vmatpush.xpose.msra.mxu0 0.0
        %340 = vmatpush.xpose.msra.mxu0 %v323
        %341 = vmatmul.f32.gmra.mxu0 %v320
        %v342 = vpop.f32.mrf.mxu0
        %v343 = vadd.f32 0.0, %v342
        %344 = vdwg.mxu0
        %v346 = vsel %vm318, %v307, 0
        %v349 = vsel %vm318, %v311, 0
        %351 = vmatpush.xpose.msra.mxu0 0.0
        %352 = vmatpush.xpose.msra.mxu0 0.0
        %353 = vmatpush.xpose.msra.mxu0 0.0
        %354 = vmatpush.xpose.msra.mxu0 0.0
        %355 = vmatpush.xpose.msra.mxu0 0.0
        %356 = vmatpush.xpose.msra.mxu0 0.0
        %357 = vmatpush.xpose.msra.mxu0 0.0
        %358 = vmatpush.xpose.msra.mxu0 0.0
        %359 = vmatpush.xpose.msra.mxu0 0.0
        %360 = vmatpush.xpose.msra.mxu0 0.0
        %361 = vmatpush.xpose.msra.mxu0 0.0
        %362 = vmatpush.xpose.msra.mxu0 0.0
        %363 = vmatpush.xpose.msra.mxu0 0.0
        %364 = vmatpush.xpose.msra.mxu0 0.0
        %365 = vmatpush.xpose.msra.mxu0 0.0
        %366 = vmatpush.xpose.msra.mxu0 %v349
        %367 = vmatmul.f32.gmra.mxu0 %v346
        %v368 = vpop.f32.mrf.mxu0
        %v369 = vadd.f32 0.0, %v368
        %370 = vdwg.mxu0
        %v372 = vsel %vm318, %v308, 0
        %v375 = vsel %vm318, %v312, 0
        %377 = vmatpush.xpose.msra.mxu0 0.0
        %378 = vmatpush.xpose.msra.mxu0 0.0
        %379 = vmatpush.xpose.msra.mxu0 0.0
        %380 = vmatpush.xpose.msra.mxu0 0.0
        %381 = vmatpush.xpose.msra.mxu0 0.0
        %382 = vmatpush.xpose.msra.mxu0 0.0
        %383 = vmatpush.xpose.msra.mxu0 0.0
        %384 = vmatpush.xpose.msra.mxu0 0.0
        %385 = vmatpush.xpose.msra.mxu0 0.0
        %386 = vmatpush.xpose.msra.mxu0 0.0
        %387 = vmatpush.xpose.msra.mxu0 0.0
        %388 = vmatpush.xpose.msra.mxu0 0.0
        %389 = vmatpush.xpose.msra.mxu0 0.0
        %390 = vmatpush.xpose.msra.mxu0 0.0
        %391 = vmatpush.xpose.msra.mxu0 0.0
        %392 = vmatpush.xpose.msra.mxu0 %v375
        %393 = vmatmul.f32.gmra.mxu0 %v372
        %v394 = vpop.f32.mrf.mxu0
        %v395 = vadd.f32 0.0, %v394
        %396 = vdwg.mxu0
        %v398 = vsel %vm318, %v309, 0
        %v401 = vsel %vm318, %v313, 0
        %403 = vmatpush.xpose.msra.mxu0 0.0
        %404 = vmatpush.xpose.msra.mxu0 0.0
        %405 = vmatpush.xpose.msra.mxu0 0.0
        %406 = vmatpush.xpose.msra.mxu0 0.0
        %407 = vmatpush.xpose.msra.mxu0 0.0
        %408 = vmatpush.xpose.msra.mxu0 0.0
        %409 = vmatpush.xpose.msra.mxu0 0.0
        %410 = vmatpush.xpose.msra.mxu0 0.0
        %411 = vmatpush.xpose.msra.mxu0 0.0
        %412 = vmatpush.xpose.msra.mxu0 0.0
        %413 = vmatpush.xpose.msra.mxu0 0.0
        %414 = vmatpush.xpose.msra.mxu0 0.0
        %415 = vmatpush.xpose.msra.mxu0 0.0
        %416 = vmatpush.xpose.msra.mxu0 0.0
        %417 = vmatpush.xpose.msra.mxu0 0.0
        %418 = vmatpush.xpose.msra.mxu0 %v401
        %419 = vmatmul.f32.gmra.mxu0 %v398
        %v420 = vpop.f32.mrf.mxu0
        %v421 = vadd.f32 0.0, %v420
        %422 = vdwg.mxu0
        %vm423 = vcmask 64512
        %v424 = vsel %vm423, %v343, -inf
        %425 = vmax.xlane.f32.xlu0 %v424
        %v426 = vpop.xlane.xlu0 %425
        %v427 = vsel %vm423, %v369, -inf
        %428 = vmax.xlane.f32.xlu0 %v427
        %v429 = vpop.xlane.xlu0 %428
        %v430 = vsel %vm423, %v395, -inf
        %431 = vmax.xlane.f32.xlu0 %v430
        %v432 = vpop.xlane.xlu0 %431
        %v433 = vsel %vm423, %v421, -inf
        %434 = vmax.xlane.f32.xlu0 %v433
        %v435 = vpop.xlane.xlu0 %434
        %v436 = vsub.f32 %v343, %v426
        %v437 = vsub.f32 %v369, %v429
        %v438 = vsub.f32 %v395, %v432
        %v439 = vsub.f32 %v421, %v435
        %v440 = vmul.f32 %v436, 1.442695
        %v441 = vpow.pop %v440
        %v442 = vmul.f32 %v437, 1.442695
        %v443 = vpow.pop %v442
        %v444 = vmul.f32 %v438, 1.442695
        %v445 = vpow.pop %v444
        %v446 = vmul.f32 %v439, 1.442695
        %v447 = vpow.pop %v446
        %v448 = vsel %vm423, %v441, 0.0
        %449 = vadd.xlane.f32.xlu0 %v448
        %v450 = vpop.xlane.xlu0 %449
        %v451 = vsel %vm423, %v443, 0.0
        %452 = vadd.xlane.f32.xlu0 %v451
        %v453 = vpop.xlane.xlu0 %452
        %v454 = vsel %vm423, %v445, 0.0
        %455 = vadd.xlane.f32.xlu0 %v454
        %v456 = vpop.xlane.xlu0 %455
        %v457 = vsel %vm423, %v447, 0.0
        %458 = vadd.xlane.f32.xlu0 %v457
        %v459 = vpop.xlane.xlu0 %458
        %v460 = vrcp.pop %v450
        %v461 = vmul.f32 %v450, %v460
        %v462 = vsub.f32 1.0, %v461
        %v463 = vmul.f32 %v460, %v462
        %v464 = vadd.f32 %v460, %v463
        %vm465 = vweird.f32 %v450
        %vm466 = vweird.f32 %v460
        %vm467 = vmor %vm465, %vm466
        %v468 = vsel %vm467, %v460, %v464
        %v469 = vand.u32 2147483647, %v450
        %vm470 = vcmp.eq.f32.partialorder %v469, 8.507059e+37
        %v471 = vand.u32 %v450, 2147483648
        %v472 = vor.u32 1.1754944e-38, %v471
        %v473 = vsel %vm470, %v472, %v468
        %v474 = vrcp.pop %v453
        %v475 = vmul.f32 %v453, %v474
        %v476 = vsub.f32 1.0, %v475
        %v477 = vmul.f32 %v474, %v476
        %v478 = vadd.f32 %v474, %v477
        %vm479 = vweird.f32 %v453
        %vm480 = vweird.f32 %v474
        %vm481 = vmor %vm479, %vm480
        %v482 = vsel %vm481, %v474, %v478
        %v483 = vand.u32 2147483647, %v453
        %vm484 = vcmp.eq.f32.partialorder %v483, 8.507059e+37
        %v485 = vand.u32 %v453, 2147483648
        %v486 = vor.u32 1.1754944e-38, %v485
        %v487 = vsel %vm484, %v486, %v482
        %v488 = vrcp.pop %v456
        %v489 = vmul.f32 %v456, %v488
        %v490 = vsub.f32 1.0, %v489
        %v491 = vmul.f32 %v488, %v490
        %v492 = vadd.f32 %v488, %v491
        %vm493 = vweird.f32 %v456
        %vm494 = vweird.f32 %v488
        %vm495 = vmor %vm493, %vm494
        %v496 = vsel %vm495, %v488, %v492
        %v497 = vand.u32 2147483647, %v456
        %vm498 = vcmp.eq.f32.partialorder %v497, 8.507059e+37
        %v499 = vand.u32 %v456, 2147483648
        %v500 = vor.u32 1.1754944e-38, %v499
        %v501 = vsel %vm498, %v500, %v496
        %v502 = vrcp.pop %v459
        %v503 = vmul.f32 %v459, %v502
        %v504 = vsub.f32 1.0, %v503
        %v505 = vmul.f32 %v502, %v504
        %v506 = vadd.f32 %v502, %v505
        %vm507 = vweird.f32 %v459
        %vm508 = vweird.f32 %v502
        %vm509 = vmor %vm507, %vm508
        %v510 = vsel %vm509, %v502, %v506
        %v511 = vand.u32 2147483647, %v459
        %vm512 = vcmp.eq.f32.partialorder %v511, 8.507059e+37
        %v513 = vand.u32 %v459, 2147483648
        %v514 = vor.u32 1.1754944e-38, %v513
        %v515 = vsel %vm512, %v514, %v510
        %v516 = vmul.f32 %v441, %v473
        %v517 = vmul.f32 %v443, %v487
        %v518 = vmul.f32 %v445, %v501
        %v519 = vmul.f32 %v447, %v515
        %v521 = vsel %vm423, %v516, 0
        %523 = vmatpush.msra.mxu0 0.0
        %524 = vmatpush.msra.mxu0 0.0
        %525 = vmatpush.msra.mxu0 0.0
        %526 = vmatpush.msra.mxu0 0.0
        %527 = vmatpush.msra.mxu0 0.0
        %528 = vmatpush.msra.mxu0 0.0
        %529 = vmatpush.msra.mxu0 0.0
        %530 = vmatpush.msra.mxu0 0.0
        %531 = vmatpush.msra.mxu0 0.0
        %532 = vmatpush.msra.mxu0 0.0
        %533 = vmatpush.msra.mxu0 0.0
        %534 = vmatpush.msra.mxu0 0.0
        %535 = vmatpush.msra.mxu0 0.0
        %536 = vmatpush.msra.mxu0 0.0
        %537 = vmatpush.msra.mxu0 0.0
        %538 = vmatpush.msra.mxu0 %v314
        %539 = vmatmul.f32.gmra.mxu0 %v521
        %v540 = vpop.f32.mrf.mxu0
        %v541 = vadd.f32 0.0, %v540
        %542 = vdwg.mxu0
        %v544 = vsel %vm423, %v517, 0
        %546 = vmatpush.msra.mxu0 0.0
        %547 = vmatpush.msra.mxu0 0.0
        %548 = vmatpush.msra.mxu0 0.0
        %549 = vmatpush.msra.mxu0 0.0
        %550 = vmatpush.msra.mxu0 0.0
        %551 = vmatpush.msra.mxu0 0.0
        %552 = vmatpush.msra.mxu0 0.0
        %553 = vmatpush.msra.mxu0 0.0
        %554 = vmatpush.msra.mxu0 0.0
        %555 = vmatpush.msra.mxu0 0.0
        %556 = vmatpush.msra.mxu0 0.0
        %557 = vmatpush.msra.mxu0 0.0
        %558 = vmatpush.msra.mxu0 0.0
        %559 = vmatpush.msra.mxu0 0.0
        %560 = vmatpush.msra.mxu0 0.0
        %561 = vmatpush.msra.mxu0 %v315
        %562 = vmatmul.f32.gmra.mxu0 %v544
        %v563 = vpop.f32.mrf.mxu0
        %v564 = vadd.f32 0.0, %v563
        %565 = vdwg.mxu0
        %v567 = vsel %vm423, %v518, 0
        %569 = vmatpush.msra.mxu0 0.0
        %570 = vmatpush.msra.mxu0 0.0
        %571 = vmatpush.msra.mxu0 0.0
        %572 = vmatpush.msra.mxu0 0.0
        %573 = vmatpush.msra.mxu0 0.0
        %574 = vmatpush.msra.mxu0 0.0
        %575 = vmatpush.msra.mxu0 0.0
        %576 = vmatpush.msra.mxu0 0.0
        %577 = vmatpush.msra.mxu0 0.0
        %578 = vmatpush.msra.mxu0 0.0
        %579 = vmatpush.msra.mxu0 0.0
        %580 = vmatpush.msra.mxu0 0.0
        %581 = vmatpush.msra.mxu0 0.0
        %582 = vmatpush.msra.mxu0 0.0
        %583 = vmatpush.msra.mxu0 0.0
        %584 = vmatpush.msra.mxu0 %v316
        %585 = vmatmul.f32.gmra.mxu0 %v567
        %v586 = vpop.f32.mrf.mxu0
        %v587 = vadd.f32 0.0, %v586
        %588 = vdwg.mxu0
        %v590 = vsel %vm423, %v519, 0
        %592 = vmatpush.msra.mxu0 0.0
        %593 = vmatpush.msra.mxu0 0.0
        %594 = vmatpush.msra.mxu0 0.0
        %595 = vmatpush.msra.mxu0 0.0
        %596 = vmatpush.msra.mxu0 0.0
        %597 = vmatpush.msra.mxu0 0.0
        %598 = vmatpush.msra.mxu0 0.0
        %599 = vmatpush.msra.mxu0 0.0
        %600 = vmatpush.msra.mxu0 0.0
        %601 = vmatpush.msra.mxu0 0.0
        %602 = vmatpush.msra.mxu0 0.0
        %603 = vmatpush.msra.mxu0 0.0
        %604 = vmatpush.msra.mxu0 0.0
        %605 = vmatpush.msra.mxu0 0.0
        %606 = vmatpush.msra.mxu0 0.0
        %607 = vmatpush.msra.mxu0 %v317
        %608 = vmatmul.f32.gmra.mxu0 %v590
        %v609 = vpop.f32.mrf.mxu0
        %v610 = vadd.f32 0.0, %v609
        %611 = vdwg.mxu0
        %612 = vst.msk [vmem:[%s289] sm:$0xff] %vm318, %v541
        %613 = vst.msk [vmem:[%s289 + $0x8] sm:$0xff] %vm318, %v564
        %614 = vst.msk [vmem:[%s289 + $0x10] sm:$0xff] %vm318, %v587
        %615 = vst.msk [vmem:[%s289 + $0x18] sm:$0xff] %vm318, %v610
        %616 = vst.msk [vmem:[%s296] sm:$0xff] %vm423, %v516
        %617 = vst.msk [vmem:[%s296 + $0x8] sm:$0xff] %vm423, %v517
        %618 = vst.msk [vmem:[%s296 + $0x10] sm:$0xff] %vm423, %v518
        %619 = vst.msk [vmem:[%s296 + $0x18] sm:$0xff] %vm423, %v519
        %s620 = sand.u32 %s128, 1
        %s621 = scalar_lea.sflag [#allocation4], %s620
        %s622 = sand.u32 %s128, 1
        %s623 = smul.addr %s622, 32
        %s624 = scalar_lea.vmem [#allocation8], %s623
        %s625 = sand.u32 %s156, 1
        %s626 = scalar_lea.sflag [#allocation10], %s625
        %s627 = sand.u32 %s156, 1
        %s628 = smul.addr %s627, 32
        %s629 = scalar_lea.vmem [#allocation9], %s628
        // Predicated region
        $region45: #{tpu_custom_call.1} parent=31 // pred_check
          %p630 = pneg %p138
        $region46: #{tpu_custom_call.1} parent=31 // pred_check_branch
          %632 = sbr.rel (%p630) target = $region48
        $region47: #{tpu_custom_call.1} parent=31 // pred_region
          %s633 = smul.u32 4, %s30
          %635 = vsyncadd %s621, 0
          %s636 = sadd.s32 %s31, %s633
          %s637 = smul.addr %s636, 8
          %s638 = scalar_lea.hbm %s3, %s637
          %s639 = sshll.u32 %s624, 4
          %s640 = int_to_ptr.vmem [resolvable:$true] %s639
          %s641 = sshll.u32 %s638, 4
          %s642 = int_to_ptr.hbm [resolvable:$true] %s641
          %647 = dma.vmem_to_hbm [thread:$0]  %s640, 512, %s642, %s621, 128, 128, 8
        $region48: #{tpu_custom_call.1} parent=31 // pred_fallthru
          _
        // Predicated region
        $region49: #{tpu_custom_call.1} parent=31 // pred_check
          %p648 = pneg %p166
        $region50: #{tpu_custom_call.1} parent=31 // pred_check_branch
          %650 = sbr.rel (%p648) target = $region52
        $region51: #{tpu_custom_call.1} parent=31 // pred_region
          %s651 = smul.u32 4, %s30
          %653 = vsyncadd %s626, 0
          %s654 = sadd.s32 %s31, %s651
          %s655 = smul.addr %s654, 8
          %s656 = scalar_lea.hbm %s4, %s655
          %s657 = sshll.u32 %s629, 4
          %s658 = int_to_ptr.vmem [resolvable:$true] %s657
          %s659 = sshll.u32 %s656, 4
          %s660 = int_to_ptr.hbm [resolvable:$true] %s659
          %665 = dma.vmem_to_hbm [thread:$0]  %s658, 512, %s660, %s626, 128, 128, 8
        $region52: #{tpu_custom_call.1} parent=31 // pred_fallthru
          _
      $region32: #{tpu_custom_call.1} parent=5 // pred_fallthru
        _
      %p666 = scmp.le.s32.totalorder 2, %s21
      // Predicated region
      $region53: #{tpu_custom_call.1} parent=5 // pred_check
        %p667 = pneg %p666
      $region54: #{tpu_custom_call.1} parent=5 // pred_check_branch
        %669 = sbr.rel (%p667) target = $region56
      $region55: #{tpu_custom_call.1} parent=5 // pred_region
        %s670 = ssub.s32 %s21, 2
        // Predicated region
        $region57: #{tpu_custom_call.1} parent=55 // pred_check
          %p671 = pneg %p144
        $region58: #{tpu_custom_call.1} parent=55 // pred_check_branch
          %673 = sbr.rel (%p671) target = $region60
        $region59: #{tpu_custom_call.1} parent=55 // pred_region
          %s674 = sand.u32 %s129, 1
          %s675 = scalar_lea.sflag [#allocation4], %s674
          %s676 = sand.u32 %s129, 1
          %s677 = smul.addr %s676, 32
          %s678 = scalar_lea.vmem [#allocation8], %s677
          %680 = dma.done %s675, 512
        $region60: #{tpu_custom_call.1} parent=55 // pred_fallthru
          _
        // Predicated region
        $region61: #{tpu_custom_call.1} parent=55 // pred_check
          %p681 = pneg %p172
        $region62: #{tpu_custom_call.1} parent=55 // pred_check_branch
          %683 = sbr.rel (%p681) target = $region64
        $region63: #{tpu_custom_call.1} parent=55 // pred_region
          %s684 = sand.u32 %s157, 1
          %s685 = scalar_lea.sflag [#allocation10], %s684
          %s686 = sand.u32 %s157, 1
          %s687 = smul.addr %s686, 32
          %s688 = scalar_lea.vmem [#allocation9], %s687
          %690 = dma.done %s685, 512
        $region64: #{tpu_custom_call.1} parent=55 // pred_fallthru
          _
      $region56: #{tpu_custom_call.1} parent=5 // pred_fallthru
        _
    $region6: #{tpu_custom_call.1} parent=1 // loop_footer
      %s25 = sadd.s32 1, %s21
    $region7: #{tpu_custom_call.1} parent=1 // loop_footer_branch
      %20 = sbr.rel target = $region3
    $region8: #{tpu_custom_call.1} parent=1 // loop_exit
      _
    %691 = vsyncpa [#allocation3], 1
    %s692 = scalar_lea.sflag [#allocation3], 1
    %693 = vsyncpa %s692, 1
    %694 = vsyncpa [#allocation6], 1
    %695 = vsyncpa [#allocation4], 1
    %s696 = scalar_lea.sflag [#allocation4], 1
    %697 = vsyncpa %s696, 1
    %698 = vsyncpa [#allocation10], 1
    %s699 = scalar_lea.sflag [#allocation10], 1
    %700 = vsyncpa %s699, 1

</llo_original>
